<compile_context>
chip_gen: v5e
topology: v5e:2x2
jax: 0.10.0
libtpu: 0.0.40
codegen_flags: <defaults>
</compile_context>

<pallas_src>
import jax
import jax.numpy as jnp
from jax.experimental import pallas as pl
from jax.experimental.pallas import tpu as pltpu

LANE = 128


def _round_up(x, m):
    return ((x + m - 1) // m) * m


def complex_conv1d_window_multichannel(x, w_r, w_i, *, padding=0, stride=1,
                                        _target_block_bytes=1 << 20):
    """x: (B, 2C, 1, S); w_r, w_i: Conv1d window weights (1, C, K) (out_channels==1)."""
    assert stride == 1, "stride != 1 not supported"  # TODO(synk): strided windowing
    x = jnp.squeeze(x, axis=2)                       # (B, 2C, S) -- free reshape
    B, R, S = x.shape
    C = R // 2
    assert R == 2 * C
    assert w_r.ndim == 3 and w_r.shape[0] == 1 and w_r.shape[1] == C
    assert w_i.shape == w_r.shape, "only the out_channels == 1 window case is supported"
    K = w_r.shape[2]
    P = int(padding)
    L = S + 2 * P - K + 1
    assert L >= 1
    assert P <= LANE and (K - 1 - P) <= LANE, "halo views are 128 lanes wide"

    dtype = x.dtype
    itemsize = jnp.dtype(dtype).itemsize

    # ---- tiling: lane-dense tiles, ~_target_block_bytes of payload per grid step ----
    target = int(_target_block_bytes)
    max_lt = max(LANE, ((target // (R * itemsize)) // LANE) * LANE)
    Lt = min(_round_up(L, LANE), max_lt)          # multiple of 128
    LT = pl.cdiv(L, Lt)
    Bb = max(1, min(B, target // (R * Lt * itemsize)))
    # keep at least 2 grid steps when possible so both TCs (v7x) / megacore get work
    if Bb > 1 and pl.cdiv(B, Bb) * LT < 2:
        Bb = (B + 1) // 2
    BG = pl.cdiv(B, Bb)

    hs = Lt // LANE                               # halo block-index stride (128-lane units)
    n128 = pl.cdiv(S, LANE)                       # number of 128-lane blocks over S
    nLt = pl.cdiv(S, Lt)                          # number of Lt-lane blocks over S

    # ---- fold the complex weights onto the 2C input-channel axis --------------------
    # direct term: out[r] += W1[r,k] * x[r];  cross term (before the half swap):
    # cross[r'] += W2[r',k] * x[r'];  out = direct + swap_halves(cross)
    wr = w_r[0]                                   # (C, K)
    wi = w_i[0]
    w1 = jnp.concatenate([wr, wr], axis=0)        # (2C, K)
    w2 = jnp.concatenate([wi, -wi], axis=0)       # (2C, K)

    def kernel(xc_ref, xp_ref, xn_ref, w1_ref, w2_ref, o_ref):
        # xc_ref: (Bb, 2C, Lt)   current input tile  (x lanes [lt*Lt, lt*Lt+Lt))
        # xp_ref: (Bb, 2C, 128)  left halo           (x lanes [lt*Lt-128, lt*Lt))
        # xn_ref: (Bb, 2C, 128)  right halo          (x lanes [lt*Lt+Lt, lt*Lt+Lt+128))
        # w1_ref, w2_ref: (2C, K) folded window weights
        # o_ref : (Bb, 2C, Lt)   output tile
        lt = pl.program_id(1)
        Bk, Rk, Ltk = xc_ref.shape
        W = Ltk + 2 * LANE

        # Stitch [prev-128 | current | next-128]; every piece is 128-lane aligned.
        ext = jnp.concatenate([xp_ref[...], xc_ref[...], xn_ref[...]], axis=-1)

        # In-kernel padding: zero every lane whose *intended* global input position is
        # outside [0, S).  This replaces the HBM-side jnp.pad and also neutralises the
        # clamped halo blocks and ragged-tail reads.
        base = lt * Ltk - LANE
        pos = base + jax.lax.broadcasted_iota(jnp.int32, (Rk, W), 1)
        valid = jnp.logical_and(pos >= 0, pos < S)
        ext = jnp.where(valid[None, :, :], ext, jnp.zeros((), ext.dtype))

        w1v = w1_ref[...].astype(jnp.float32)
        w2v = w2_ref[...].astype(jnp.float32)

        d_acc = jnp.zeros((Bk, Rk, Ltk), jnp.float32)
        c_acc = jnp.zeros((Bk, Rk, Ltk), jnp.float32)
        # K is tiny & static -> fully unrolled.  TODO(synk): route the tap shift through
        # pltpu.roll (XLU) + masked halo blend if the load/VALU path ever binds.
        for k in range(K):
            s = LANE - P + k
            tap = ext[:, :, s:s + Ltk].astype(jnp.float32)
            d_acc = d_acc + w1v[:, k:k + 1] * tap
            c_acc = c_acc + w2v[:, k:k + 1] * tap

        # One real<->imag half-swap of the cross term per tile (not per tap),
        # then a single full-tile, lane-dense store.
        c_sw = jnp.concatenate([c_acc[:, C:, :], c_acc[:, :C, :]], axis=1)
        o_ref[...] = (d_acc + c_sw).astype(o_ref.dtype)

    # ---- index maps (clamped so every DMA stays in bounds; the mask fixes the data) --
    def cur_map(b, lt):
        return (b, 0, jnp.minimum(lt, nLt - 1))

    def prev_map(b, lt):
        return (b, 0, jnp.maximum(jnp.minimum(lt * hs - 1, n128 - 1), 0))

    def next_map(b, lt):
        return (b, 0, jnp.minimum((lt + 1) * hs, n128 - 1))

    flops = 8 * B * C * L * K                     # 4 real MACs per tap per complex output
    bytes_accessed = int(itemsize * (B * R * S                 # input, read once
                                     + BG * LT * Bb * R * 2 * LANE   # halo re-reads
                                     + B * R * L)                     # output
                         + 2 * R * K * jnp.dtype(w1.dtype).itemsize)  # weights

    out = pl.pallas_call(
        kernel,
        out_shape=jax.ShapeDtypeStruct((B, R, L), dtype),     # exact shape; ragged last
        grid=(BG, LT),                                         # block is masked by Pallas
        in_specs=[
            pl.BlockSpec((Bb, R, Lt), cur_map),
            pl.BlockSpec((Bb, R, LANE), prev_map),
            pl.BlockSpec((Bb, R, LANE), next_map),
            pl.BlockSpec((R, K), lambda b, lt: (0, 0)),
            pl.BlockSpec((R, K), lambda b, lt: (0, 0)),
        ],
        out_specs=pl.BlockSpec((Bb, R, Lt), lambda b, lt: (b, 0, lt)),
        compiler_params=pltpu.CompilerParams(
            dimension_semantics=("parallel", "parallel"),
            vmem_limit_bytes=32 * 1024 * 1024),
        cost_estimate=pl.CostEstimate(
            flops=flops, transcendentals=0, bytes_accessed=bytes_accessed),
    )(x, x, x, w1, w2)
    return out                                    # (B, 2C, L) -- no wrapper slice/reshape


def _reference(x, w_r, w_i, padding):
    """Pure-JAX reference of the intended forward semantics."""
    x = jnp.squeeze(x, axis=2)
    B, NC, S = x.shape
    C = NC // 2
    K = w_r.shape[2]
    xr, xi = x[:, :C, :], x[:, C:, :]
    xr_p = jnp.pad(xr, ((0, 0), (0, 0), (padding, padding)))
    xi_p = jnp.pad(xi, ((0, 0), (0, 0), (padding, padding)))
    L = S + 2 * padding - K + 1
    pr = jnp.stack([xr_p[:, :, k:k + L] for k in range(K)], axis=-1)  # (B,C,L,K)
    pi = jnp.stack([xi_p[:, :, k:k + L] for k in range(K)], axis=-1)
    Wr, Wi = w_r[0], w_i[0]                                           # (C,K)
    out_r = jnp.einsum('ck,bclk->bcl', Wr, pr) - jnp.einsum('ck,bclk->bcl', Wi, pi)
    out_i = jnp.einsum('ck,bclk->bcl', Wr, pi) + jnp.einsum('ck,bclk->bcl', Wi, pr)
    return jnp.concatenate([out_r, out_i], axis=1)


if __name__ == "__main__":
    # Small shapes consistent with the module:
    #   batch=2, num_channels=8 (-> 4 complex channels), H=1, seq_len=16
    #   module params: in_channels=4, out_channels=1, kernel_size=3, stride=1,
    #                  padding=1, bias=False
    B, C, S, K, PAD = 2, 4, 16, 3, 1

    key = jax.random.PRNGKey(0)
    kx, kr, ki = jax.random.split(key, 3)

    x = jax.random.normal(kx, (B, 2 * C, 1, S), dtype=jnp.float32)

    bound = 1.0 / jnp.sqrt(jnp.float32(C * K))
    w_r = jax.random.uniform(kr, (1, C, K), jnp.float32, -bound, bound)
    w_i = jax.random.uniform(ki, (1, C, K), jnp.float32, -bound, bound)

    out = complex_conv1d_window_multichannel(x, w_r, w_i, padding=PAD, stride=1)
    out = jax.block_until_ready(out)

    ref = _reference(x, w_r, w_i, PAD)
    assert out.shape == (B, 2 * C, S + 2 * PAD - K + 1), out.shape
    assert jnp.allclose(out, ref, atol=1e-5, rtol=1e-5), "mismatch vs reference"

    # Also exercise the multi-tile / halo path (forced 128-lane tiles, still tiny).
    S2 = 700
    x2 = jax.random.normal(kx, (B, 2 * C, 1, S2), dtype=jnp.float32)
    out2 = complex_conv1d_window_multichannel(
        x2, w_r, w_i, padding=PAD, stride=1, _target_block_bytes=8 * 128 * 4)
    out2 = jax.block_until_ready(out2)
    ref2 = _reference(x2, w_r, w_i, PAD)
    assert out2.shape == (B, 2 * C, S2 + 2 * PAD - K + 1), out2.shape
    assert jnp.allclose(out2, ref2, atol=1e-5, rtol=1e-5), "mismatch vs reference (tiled)"

    print("KERNEL_OK")
</pallas_src>

<mosaic_0001>
module attributes {stable_mosaic.version = 11 : i64} {
  func.func @kernel(%arg0: i32, %arg1: i32, %arg2: memref<1x8x128xf32, #tpu.memory_space<vmem>>, %arg3: memref<1x8x128xf32, #tpu.memory_space<vmem>>, %arg4: memref<1x8x128xf32, #tpu.memory_space<vmem>>, %arg5: memref<8x3xf32, #tpu.memory_space<vmem>>, %arg6: memref<8x3xf32, #tpu.memory_space<vmem>>, %arg7: memref<1x8x128xf32, #tpu.memory_space<vmem>>) attributes {dimension_semantics = [#tpu.dimension_semantics<parallel>, #tpu.dimension_semantics<parallel>], iteration_bounds = array<i64: 2, 1>, scalar_prefetch = 0 : i64, scratch_operands = 0 : i64, tpu.core_type = #tpu.core_type<tc>, window_params = [{transform_indices = @transform_0, window_bounds = array<i64: 1, 8, 128>}, {transform_indices = @transform_1, window_bounds = array<i64: 1, 8, 128>}, {transform_indices = @transform_2, window_bounds = array<i64: 1, 8, 128>}, {pipeline_mode = #tpu.pipeline_mode<synchronous>, transform_indices = @transform_3, window_bounds = array<i64: 8, 3>}, {pipeline_mode = #tpu.pipeline_mode<synchronous>, transform_indices = @transform_4, window_bounds = array<i64: 8, 3>}, {transform_indices = @transform_5, window_bounds = array<i64: 1, 8, 128>}]} {
    %c0 = arith.constant 0 : index
    %c0_0 = arith.constant 0 : index
    %c0_1 = arith.constant 0 : index
    %0 = vector.load %arg3[%c0, %c0_0, %c0_1] : memref<1x8x128xf32, #tpu.memory_space<vmem>>, vector<1x8x128xf32>
    %c0_2 = arith.constant 0 : index
    %c0_3 = arith.constant 0 : index
    %c0_4 = arith.constant 0 : index
    %1 = vector.load %arg2[%c0_2, %c0_3, %c0_4] : memref<1x8x128xf32, #tpu.memory_space<vmem>>, vector<1x8x128xf32>
    %c0_5 = arith.constant 0 : index
    %c0_6 = arith.constant 0 : index
    %c0_7 = arith.constant 0 : index
    %2 = vector.load %arg4[%c0_5, %c0_6, %c0_7] : memref<1x8x128xf32, #tpu.memory_space<vmem>>, vector<1x8x128xf32>
    %3 = tpu.concatenate %0, %1, %2 in 2 : vector<1x8x128xf32>, vector<1x8x128xf32>, vector<1x8x128xf32> -> vector<1x8x384xf32>
    %c128_i32 = arith.constant 128 : i32
    %4 = arith.muli %arg1, %c128_i32 : i32
    %c128_i32_8 = arith.constant 128 : i32
    %5 = arith.subi %4, %c128_i32_8 : i32
    %6 = tpu.iota {dimensions = array<i32: 1>} : vector<8x384xi32>
    %7 = vector.broadcast %5 : i32 to vector<8x384xi32>
    %8 = arith.addi %7, %6 : vector<8x384xi32>
    %c0_i32 = arith.constant 0 : i32
    %9 = vector.broadcast %c0_i32 : i32 to vector<8x384xi32>
    %10 = arith.cmpi sge, %8, %9 : vector<8x384xi32>
    %c16_i32 = arith.constant 16 : i32
    %11 = vector.broadcast %c16_i32 : i32 to vector<8x384xi32>
    %12 = arith.cmpi slt, %8, %11 : vector<8x384xi32>
    %13 = arith.andi %10, %12 : vector<8x384xi1>
    %14 = vector.shape_cast %13 : vector<8x384xi1> to vector<1x8x384xi1>
    %cst = arith.constant 0.000000e+00 : f32
    %15 = vector.broadcast %cst : f32 to vector<1x8x384xf32>
    %16 = arith.select %14, %3, %15 : vector<1x8x384xi1>, vector<1x8x384xf32>
    %c0_9 = arith.constant 0 : index
    %c0_10 = arith.constant 0 : index
    %17 = vector.load %arg5[%c0_9, %c0_10] : memref<8x3xf32, #tpu.memory_space<vmem>>, vector<8x3xf32>
    %c0_11 = arith.constant 0 : index
    %c0_12 = arith.constant 0 : index
    %18 = vector.load %arg6[%c0_11, %c0_12] : memref<8x3xf32, #tpu.memory_space<vmem>>, vector<8x3xf32>
    %cst_13 = arith.constant 0.000000e+00 : f32
    %19 = vector.broadcast %cst_13 : f32 to vector<1x8x128xf32>
    %cst_14 = arith.constant 0.000000e+00 : f32
    %20 = vector.broadcast %cst_14 : f32 to vector<1x8x128xf32>
    %21 = vector.extract_strided_slice %16 {offsets = [0, 0, 127], sizes = [1, 8, 128], strides = [1, 1, 1]} : vector<1x8x384xf32> to vector<1x8x128xf32>
    %22 = vector.extract_strided_slice %17 {offsets = [0, 0], sizes = [8, 1], strides = [1, 1]} : vector<8x3xf32> to vector<8x1xf32>
    %23 = vector.shape_cast %22 : vector<8x1xf32> to vector<1x8x1xf32>
    %24 = vector.broadcast %23 : vector<1x8x1xf32> to vector<1x8x128xf32>
    %25 = arith.mulf %24, %21 : vector<1x8x128xf32>
    %26 = arith.addf %19, %25 : vector<1x8x128xf32>
    %27 = vector.extract_strided_slice %18 {offsets = [0, 0], sizes = [8, 1], strides = [1, 1]} : vector<8x3xf32> to vector<8x1xf32>
    %28 = vector.shape_cast %27 : vector<8x1xf32> to vector<1x8x1xf32>
    %29 = vector.broadcast %28 : vector<1x8x1xf32> to vector<1x8x128xf32>
    %30 = arith.mulf %29, %21 : vector<1x8x128xf32>
    %31 = arith.addf %20, %30 : vector<1x8x128xf32>
    %32 = vector.extract_strided_slice %16 {offsets = [0, 0, 128], sizes = [1, 8, 128], strides = [1, 1, 1]} : vector<1x8x384xf32> to vector<1x8x128xf32>
    %33 = vector.extract_strided_slice %17 {offsets = [0, 1], sizes = [8, 1], strides = [1, 1]} : vector<8x3xf32> to vector<8x1xf32>
    %34 = vector.shape_cast %33 : vector<8x1xf32> to vector<1x8x1xf32>
    %35 = vector.broadcast %34 : vector<1x8x1xf32> to vector<1x8x128xf32>
    %36 = arith.mulf %35, %32 : vector<1x8x128xf32>
    %37 = arith.addf %26, %36 : vector<1x8x128xf32>
    %38 = vector.extract_strided_slice %18 {offsets = [0, 1], sizes = [8, 1], strides = [1, 1]} : vector<8x3xf32> to vector<8x1xf32>
    %39 = vector.shape_cast %38 : vector<8x1xf32> to vector<1x8x1xf32>
    %40 = vector.broadcast %39 : vector<1x8x1xf32> to vector<1x8x128xf32>
    %41 = arith.mulf %40, %32 : vector<1x8x128xf32>
    %42 = arith.addf %31, %41 : vector<1x8x128xf32>
    %43 = vector.extract_strided_slice %16 {offsets = [0, 0, 129], sizes = [1, 8, 128], strides = [1, 1, 1]} : vector<1x8x384xf32> to vector<1x8x128xf32>
    %44 = vector.extract_strided_slice %17 {offsets = [0, 2], sizes = [8, 1], strides = [1, 1]} : vector<8x3xf32> to vector<8x1xf32>
    %45 = vector.shape_cast %44 : vector<8x1xf32> to vector<1x8x1xf32>
    %46 = vector.broadcast %45 : vector<1x8x1xf32> to vector<1x8x128xf32>
    %47 = arith.mulf %46, %43 : vector<1x8x128xf32>
    %48 = arith.addf %37, %47 : vector<1x8x128xf32>
    %49 = vector.extract_strided_slice %18 {offsets = [0, 2], sizes = [8, 1], strides = [1, 1]} : vector<8x3xf32> to vector<8x1xf32>
    %50 = vector.shape_cast %49 : vector<8x1xf32> to vector<1x8x1xf32>
    %51 = vector.broadcast %50 : vector<1x8x1xf32> to vector<1x8x128xf32>
    %52 = arith.mulf %51, %43 : vector<1x8x128xf32>
    %53 = arith.addf %42, %52 : vector<1x8x128xf32>
    %54 = vector.extract_strided_slice %53 {offsets = [0, 4, 0], sizes = [1, 4, 128], strides = [1, 1, 1]} : vector<1x8x128xf32> to vector<1x4x128xf32>
    %55 = vector.extract_strided_slice %53 {offsets = [0, 0, 0], sizes = [1, 4, 128], strides = [1, 1, 1]} : vector<1x8x128xf32> to vector<1x4x128xf32>
    %56 = tpu.concatenate %54, %55 in 1 : vector<1x4x128xf32>, vector<1x4x128xf32> -> vector<1x8x128xf32>
    %57 = arith.addf %48, %56 : vector<1x8x128xf32>
    %c0_15 = arith.constant 0 : index
    %c0_16 = arith.constant 0 : index
    %c0_17 = arith.constant 0 : index
    %58 = vector.load %arg7[%c0_15, %c0_16, %c0_17] : memref<1x8x128xf32, #tpu.memory_space<vmem>>, vector<1x8x128xf32>
    tpu.vector_store %arg7[%c0_15, %c0_16, %c0_17], %57 {strides = array<i32>} : memref<1x8x128xf32, #tpu.memory_space<vmem>>, vector<1x8x128xf32>,
    return
  }
  func.func @transform_0(%arg0: i32, %arg1: i32) -> (i32, i32, i32) {
    %c0_i32 = arith.constant 0 : i32
    %0 = arith.minsi %arg1, %c0_i32 : i32
    %c0_i32_0 = arith.constant 0 : i32
    %c0_i32_1 = arith.constant 0 : i32
    return %arg0, %c0_i32_0, %0 : i32, i32, i32
  }
  func.func @transform_1(%arg0: i32, %arg1: i32) -> (i32, i32, i32) {
    %c1_i32 = arith.constant 1 : i32
    %0 = arith.muli %arg1, %c1_i32 : i32
    %c1_i32_0 = arith.constant 1 : i32
    %1 = arith.subi %0, %c1_i32_0 : i32
    %c0_i32 = arith.constant 0 : i32
    %2 = arith.minsi %1, %c0_i32 : i32
    %c0_i32_1 = arith.constant 0 : i32
    %3 = arith.maxsi %2, %c0_i32_1 : i32
    %c0_i32_2 = arith.constant 0 : i32
    %c0_i32_3 = arith.constant 0 : i32
    return %arg0, %c0_i32_2, %3 : i32, i32, i32
  }
  func.func @transform_2(%arg0: i32, %arg1: i32) -> (i32, i32, i32) {
    %c1_i32 = arith.constant 1 : i32
    %0 = arith.addi %arg1, %c1_i32 : i32
    %c1_i32_0 = arith.constant 1 : i32
    %1 = arith.muli %0, %c1_i32_0 : i32
    %c0_i32 = arith.constant 0 : i32
    %2 = arith.minsi %1, %c0_i32 : i32
    %c0_i32_1 = arith.constant 0 : i32
    %c0_i32_2 = arith.constant 0 : i32
    return %arg0, %c0_i32_1, %2 : i32, i32, i32
  }
  func.func @transform_3(%arg0: i32, %arg1: i32) -> (i32, i32) {
    %c0_i32 = arith.constant 0 : i32
    %c0_i32_0 = arith.constant 0 : i32
    %c0_i32_1 = arith.constant 0 : i32
    return %c0_i32, %c0_i32_0 : i32, i32
  }
  func.func @transform_4(%arg0: i32, %arg1: i32) -> (i32, i32) {
    %c0_i32 = arith.constant 0 : i32
    %c0_i32_0 = arith.constant 0 : i32
    %c0_i32_1 = arith.constant 0 : i32
    return %c0_i32, %c0_i32_0 : i32, i32
  }
  func.func @transform_5(%arg0: i32, %arg1: i32) -> (i32, i32, i32) {
    %c0_i32 = arith.constant 0 : i32
    %c0_i32_0 = arith.constant 0 : i32
    return %arg0, %c0_i32, %arg1 : i32, i32, i32
  }
}

</mosaic_0001>

<llo_original>
// kernel: tpu_custom_call.1
$region0: #{tpu_custom_call.1}
  #allocation0 [shape = 'u32[]', space=smem, size = 0x4, offset = 0x4, fixed_abs, tag = 'smem constant byte address 0x4 - core index']
  #allocation1 [shape = 'u32[72,128]{1,0:T(1,128)}', space=vmem, size = 0x9000, scoped, tag = 'internal scratch']
  %s0 = inlined_call_operand.vmem [shape: f32[2,8,16], index: 0, kind: input, shape index: {}]
  %s1 = inlined_call_operand.hbm [shape: f32[2,8,16], index: 1, kind: input, shape index: {}]
  %s2 = inlined_call_operand.hbm [shape: f32[2,8,16], index: 2, kind: input, shape index: {}]
  %s3 = inlined_call_operand.vmem [shape: f32[8,3], index: 3, kind: input, shape index: {}]
  %s4 = inlined_call_operand.vmem [shape: f32[8,3], index: 4, kind: input, shape index: {}]
  %s5 = inlined_call_operand.hbm [shape: f32[2,8,16], index: 5, kind: output, shape index: {}]
  %s6 = sld [smem:[#allocation0]]
  $region61: #{tpu_custom_call.1} parent=0
    _
  %s8 = ssub.s32 1, %s6
  %s9 = scalar_select 0, %s8, %s6
  $region1: #{tpu_custom_call.1} parent=0
    #allocation2 [shape = 'u8[8192]{0}', space=vmem, size = 0x2000, scoped, tag = 'input window, operand 1']
    #allocation3 [shape = 's32[2]{0}', space=sflag, size = 0x8, scoped, tag = 'scoped memory for tpu_custom_call.1']
    #allocation4 [shape = 's32[2]{0}', space=sflag, size = 0x8, scoped, tag = 'scoped memory for tpu_custom_call.1']
    #allocation5 [shape = 'u8[8192]{0}', space=vmem, size = 0x2000, scoped, tag = 'input window, operand 2']
    #allocation6 [shape = 's32[2]{0}', space=sflag, size = 0x8, scoped, tag = 'scoped memory for tpu_custom_call.1']
    #allocation7 [shape = 'u8[8192]{0}', space=vmem, size = 0x2000, scoped, tag = 'output window, operand 0']
    %10 = vsyncpa [#allocation3], 0
    %s11 = scalar_lea.sflag [#allocation3], 1
    %12 = vsyncpa %s11, 0
    %13 = vsyncpa [#allocation6], 0
    %s14 = scalar_lea.sflag [#allocation6], 1
    %15 = vsyncpa %s14, 0
    %16 = vsyncpa [#allocation4], 0
    %s17 = scalar_lea.sflag [#allocation4], 1
    %18 = vsyncpa %s17, 0
    loop: start=0, step=1, limit=4
    $region2: #{tpu_custom_call.1} parent=1 // loop_pre_header
      _
    $region3: #{tpu_custom_call.1} parent=1 // loop_header
      %s20 = sphi 0, %s24
      %p21 = scmp.ge.s32.totalorder %s20, 4
      %s27 = sphi 0, %s39
      %s28 = sphi 0, %s35
      %s29 = sphi 0, %s27
      %s30 = sphi 0, %s28
      %s31 = sphi 0, %s29
      %s32 = sphi 0, %s30
      %s48 = sphi 0, %s50
      %s51 = sphi 0, %s48
      %s52 = sphi 0, %s51
      %s68 = sphi 0, %s52
      %s86 = sphi 0, %s88
      %s89 = sphi 0, %s86
      %s90 = sphi 0, %s89
      %s106 = sphi 0, %s90
      %s120 = sphi 0, %s122
      %s123 = sphi 0, %s120
      %s124 = sphi 0, %s123
      %s140 = sphi 0, %s124
      %s144 = sphi 0, %s144
      %s146 = sphi 0, %s144
      %s147 = sphi 0, %s146
      %s161 = sphi 0, %s147
      %s165 = sphi 0, %s165
      %s167 = sphi 0, %s165
      %s168 = sphi 0, %s167
      %s182 = sphi 0, %s168
      %s190 = sphi 0, %s192
      %s193 = sphi 0, %s190
      %s194 = sphi 0, %s193
      %s210 = sphi 0, %s194
    $region4: #{tpu_custom_call.1} parent=1 // loop_header_branch
      %23 = sbr.rel (%p21) target = $region8
    $region5: #{tpu_custom_call.1} parent=1 // loop_body
      %s25 = ssub.s32 %s20, 1
      %s26 = ssub.s32 %s20, 2
      %s33 = sadd.s32 1, %s28
      %p34 = scmp.ge.s32.totalorder %s33, 1
      %s35 = scalar_select %p34, 0, %s33
      %s36 = sadd.s32 1, %s27
      %s37 = scalar_select %p34, %s36, %s27
      %p38 = scmp.ge.s32.totalorder %s37, 2
      %s39 = scalar_select %p38, 0, %s37
      %p40 = scmp.lt.s32.totalorder %s28, 0
      %s41 = scalar_select %p40, %s28, 0
      %p42 = scmp.lt.s32.totalorder %s35, 0
      %s43 = scalar_select %p42, %s35, 0
      %s44 = ssub.s32 %s27, %s39
      %s45 = ssub.s32 %s41, %s43
      %s46 = sor.u32 %s44, %s45
      %p47 = scmp.eq.s32.totalorder %s46, 0
      %s49 = sadd.s32 %s48, 1
      %s50 = scalar_select %p47, %s48, %s49
      %p53 = pneg %p47
      %p54 = scmp.eq.s32.totalorder %s20, 1
      %p55 = por %p53, %p54
      %p56 = scmp.ne.s32.totalorder %s48, %s51
      %p57 = scmp.eq.s32.totalorder %s20, 0
      %p58 = por %p56, %p57
      %p59 = scmp.ne.s32.totalorder %s48, %s51
      %p60 = scmp.eq.s32.totalorder %s25, 1
      %p61 = por %p59, %p60
      %p62 = scmp.ne.s32.totalorder %s51, %s52
      %p63 = scmp.eq.s32.totalorder %s25, 0
      %p64 = por %p62, %p63
      %p65 = scmp.ne.s32.totalorder %s51, %s52
      %p66 = scmp.eq.s32.totalorder %s26, 1
      %p67 = por %p65, %p66
      %p69 = scmp.ne.s32.totalorder %s52, %s68
      %p70 = scmp.eq.s32.totalorder %s26, 0
      %p71 = por %p69, %p70
      %s72 = ssub.s32 %s28, 1
      %p73 = scmp.lt.s32.totalorder %s72, 0
      %s74 = scalar_select %p73, %s72, 0
      %p75 = scmp.gt.s32.totalorder %s74, 0
      %s76 = scalar_select %p75, %s74, 0
      %s77 = ssub.s32 %s35, 1
      %p78 = scmp.lt.s32.totalorder %s77, 0
      %s79 = scalar_select %p78, %s77, 0
      %p80 = scmp.gt.s32.totalorder %s79, 0
      %s81 = scalar_select %p80, %s79, 0
      %s82 = ssub.s32 %s27, %s39
      %s83 = ssub.s32 %s76, %s81
      %s84 = sor.u32 %s82, %s83
      %p85 = scmp.eq.s32.totalorder %s84, 0
      %s87 = sadd.s32 %s86, 1
      %s88 = scalar_select %p85, %s86, %s87
      %p91 = pneg %p85
      %p92 = scmp.eq.s32.totalorder %s20, 1
      %p93 = por %p91, %p92
      %p94 = scmp.ne.s32.totalorder %s86, %s89
      %p95 = scmp.eq.s32.totalorder %s20, 0
      %p96 = por %p94, %p95
      %p97 = scmp.ne.s32.totalorder %s86, %s89
      %p98 = scmp.eq.s32.totalorder %s25, 1
      %p99 = por %p97, %p98
      %p100 = scmp.ne.s32.totalorder %s89, %s90
      %p101 = scmp.eq.s32.totalorder %s25, 0
      %p102 = por %p100, %p101
      %p103 = scmp.ne.s32.totalorder %s89, %s90
      %p104 = scmp.eq.s32.totalorder %s26, 1
      %p105 = por %p103, %p104
      %p107 = scmp.ne.s32.totalorder %s90, %s106
      %p108 = scmp.eq.s32.totalorder %s26, 0
      %p109 = por %p107, %p108
      %s110 = sadd.s32 %s28, 1
      %p111 = scmp.lt.s32.totalorder %s110, 0
      %s112 = scalar_select %p111, %s110, 0
      %s113 = sadd.s32 %s35, 1
      %p114 = scmp.lt.s32.totalorder %s113, 0
      %s115 = scalar_select %p114, %s113, 0
      %s116 = ssub.s32 %s27, %s39
      %s117 = ssub.s32 %s112, %s115
      %s118 = sor.u32 %s116, %s117
      %p119 = scmp.eq.s32.totalorder %s118, 0
      %s121 = sadd.s32 %s120, 1
      %s122 = scalar_select %p119, %s120, %s121
      %p125 = pneg %p119
      %p126 = scmp.eq.s32.totalorder %s20, 1
      %p127 = por %p125, %p126
      %p128 = scmp.ne.s32.totalorder %s120, %s123
      %p129 = scmp.eq.s32.totalorder %s20, 0
      %p130 = por %p128, %p129
      %p131 = scmp.ne.s32.totalorder %s120, %s123
      %p132 = scmp.eq.s32.totalorder %s25, 1
      %p133 = por %p131, %p132
      %p134 = scmp.ne.s32.totalorder %s123, %s124
      %p135 = scmp.eq.s32.totalorder %s25, 0
      %p136 = por %p134, %p135
      %p137 = scmp.ne.s32.totalorder %s123, %s124
      %p138 = scmp.eq.s32.totalorder %s26, 1
      %p139 = por %p137, %p138
      %p141 = scmp.ne.s32.totalorder %s124, %s140
      %p142 = scmp.eq.s32.totalorder %s26, 0
      %p143 = por %p141, %p142
      %s145 = sadd.s32 %s144, 1
      %p148 = scmp.eq.s32.totalorder %s20, 1
      %p149 = scmp.ne.s32.totalorder %s144, %s146
      %p150 = scmp.eq.s32.totalorder %s20, 0
      %p151 = por %p149, %p150
      %p152 = scmp.ne.s32.totalorder %s144, %s146
      %p153 = scmp.eq.s32.totalorder %s25, 1
      %p154 = por %p152, %p153
      %p155 = scmp.ne.s32.totalorder %s146, %s147
      %p156 = scmp.eq.s32.totalorder %s25, 0
      %p157 = por %p155, %p156
      %p158 = scmp.ne.s32.totalorder %s146, %s147
      %p159 = scmp.eq.s32.totalorder %s26, 1
      %p160 = por %p158, %p159
      %p162 = scmp.ne.s32.totalorder %s147, %s161
      %p163 = scmp.eq.s32.totalorder %s26, 0
      %p164 = por %p162, %p163
      %s166 = sadd.s32 %s165, 1
      %p169 = scmp.eq.s32.totalorder %s20, 1
      %p170 = scmp.ne.s32.totalorder %s165, %s167
      %p171 = scmp.eq.s32.totalorder %s20, 0
      %p172 = por %p170, %p171
      %p173 = scmp.ne.s32.totalorder %s165, %s167
      %p174 = scmp.eq.s32.totalorder %s25, 1
      %p175 = por %p173, %p174
      %p176 = scmp.ne.s32.totalorder %s167, %s168
      %p177 = scmp.eq.s32.totalorder %s25, 0
      %p178 = por %p176, %p177
      %p179 = scmp.ne.s32.totalorder %s167, %s168
      %p180 = scmp.eq.s32.totalorder %s26, 1
      %p181 = por %p179, %p180
      %p183 = scmp.ne.s32.totalorder %s168, %s182
      %p184 = scmp.eq.s32.totalorder %s26, 0
      %p185 = por %p183, %p184
      %s186 = ssub.s32 %s27, %s39
      %s187 = ssub.s32 %s28, %s35
      %s188 = sor.u32 %s186, %s187
      %p189 = scmp.eq.s32.totalorder %s188, 0
      %s191 = sadd.s32 %s190, 1
      %s192 = scalar_select %p189, %s190, %s191
      %p195 = pneg %p189
      %p196 = scmp.eq.s32.totalorder %s20, 1
      %p197 = por %p195, %p196
      %p198 = scmp.ne.s32.totalorder %s190, %s193
      %p199 = scmp.eq.s32.totalorder %s20, 0
      %p200 = por %p198, %p199
      %p201 = scmp.ne.s32.totalorder %s190, %s193
      %p202 = scmp.eq.s32.totalorder %s25, 1
      %p203 = por %p201, %p202
      %p204 = scmp.ne.s32.totalorder %s193, %s194
      %p205 = scmp.eq.s32.totalorder %s25, 0
      %p206 = por %p204, %p205
      %p207 = scmp.ne.s32.totalorder %s193, %s194
      %p208 = scmp.eq.s32.totalorder %s26, 1
      %p209 = por %p207, %p208
      %p211 = scmp.ne.s32.totalorder %s194, %s210
      %p212 = scmp.eq.s32.totalorder %s26, 0
      %p213 = por %p211, %p212
      %p214 = scmp.le.s32.totalorder 1, %s20
      %p215 = scmp.lt.s32.totalorder %s20, 3
      %p216 = pnand %p214, %p215
      %p217 = pneg %p216
      // Predicated region
      $region9: #{tpu_custom_call.1} parent=5 // pred_check
        _
      $region10: #{tpu_custom_call.1} parent=5 // pred_check_branch
        %219 = sbr.rel (%p216) target = $region12
      $region11: #{tpu_custom_call.1} parent=5 // pred_region
        %s220 = ssub.s32 %s20, 1
        // Predicated region
        $region13: #{tpu_custom_call.1} parent=11 // pred_check
          %p221 = pneg %p157
        $region14: #{tpu_custom_call.1} parent=11 // pred_check_branch
          %223 = sbr.rel (%p221) target = $region16
        $region15: #{tpu_custom_call.1} parent=11 // pred_region
          _
        $region16: #{tpu_custom_call.1} parent=11 // pred_fallthru
          _
        // Predicated region
        $region17: #{tpu_custom_call.1} parent=11 // pred_check
          %p224 = pneg %p178
        $region18: #{tpu_custom_call.1} parent=11 // pred_check_branch
          %226 = sbr.rel (%p224) target = $region20
        $region19: #{tpu_custom_call.1} parent=11 // pred_region
          _
        $region20: #{tpu_custom_call.1} parent=11 // pred_fallthru
          _
      $region12: #{tpu_custom_call.1} parent=5 // pred_fallthru
        _
      %p227 = scmp.lt.s32.totalorder %s20, 2
      // Predicated region
      $region21: #{tpu_custom_call.1} parent=5 // pred_check
        %p228 = pneg %p227
      $region22: #{tpu_custom_call.1} parent=5 // pred_check_branch
        %230 = sbr.rel (%p228) target = $region24
      $region23: #{tpu_custom_call.1} parent=5 // pred_region
        // Predicated region
        $region25: #{tpu_custom_call.1} parent=23 // pred_check
          %p231 = pneg %p58
        $region26: #{tpu_custom_call.1} parent=23 // pred_check_branch
          %233 = sbr.rel (%p231) target = $region28
        $region27: #{tpu_custom_call.1} parent=23 // pred_region
          %p234 = scmp.lt.s32.totalorder %s28, 0
          %s235 = scalar_select %p234, %s28, 0
          %p236 = scmp.lt.s32.totalorder %s27, 1
          %s237 = scalar_select %p236, %s27, 1
          %p238 = scmp.lt.s32.totalorder %s235, 0
          %s239 = scalar_select %p238, %s235, 0
          %s240 = sadd.s32 %s239, %s237
          %s241 = smul.addr %s240, 8
          %s242 = scalar_lea.vmem %s0, %s241
          %p243 = scmp.lt.s32.totalorder %s28, 0
          %s244 = scalar_select %p243, %s28, 0
        $region28: #{tpu_custom_call.1} parent=23 // pred_fallthru
          _
        // Predicated region
        $region29: #{tpu_custom_call.1} parent=23 // pred_check
          %p245 = pneg %p96
        $region30: #{tpu_custom_call.1} parent=23 // pred_check_branch
          %247 = sbr.rel (%p245) target = $region32
        $region31: #{tpu_custom_call.1} parent=23 // pred_region
          %s248 = sand.u32 %s86, 1
          %s249 = scalar_lea.sflag [#allocation3], %s248
          %s250 = sand.u32 %s86, 1
          %s251 = smul.addr %s250, 8
          %s252 = scalar_lea.vmem [#allocation2], %s251
          %s253 = ssub.s32 %s28, 1
          %p254 = scmp.lt.s32.totalorder %s253, 0
          %s255 = scalar_select %p254, %s253, 0
          %p256 = scmp.gt.s32.totalorder %s255, 0
          %s257 = scalar_select %p256, %s255, 0
          %259 = vsyncadd %s249, 0
          %s260 = sadd.s32 %s257, %s27
          %s261 = smul.addr %s260, 8
          %s262 = scalar_lea.hbm %s1, %s261
          %s264 = sshll.u32 %s262, 4
          %s265 = int_to_ptr.hbm [resolvable:$true] %s264
          %s266 = sshll.u32 %s252, 4
          %s267 = int_to_ptr.vmem [resolvable:$true] %s266
          %269 = dma.hbm_to_vmem [thread:$0]  %s265, 128, %s267, %s249
        $region32: #{tpu_custom_call.1} parent=23 // pred_fallthru
          _
        // Predicated region
        $region33: #{tpu_custom_call.1} parent=23 // pred_check
          %p270 = pneg %p130
        $region34: #{tpu_custom_call.1} parent=23 // pred_check_branch
          %272 = sbr.rel (%p270) target = $region36
        $region35: #{tpu_custom_call.1} parent=23 // pred_region
          %s273 = sand.u32 %s120, 1
          %s274 = scalar_lea.sflag [#allocation6], %s273
          %s275 = sand.u32 %s120, 1
          %s276 = smul.addr %s275, 8
          %s277 = scalar_lea.vmem [#allocation5], %s276
          %s278 = sadd.s32 %s28, 1
          %p279 = scmp.lt.s32.totalorder %s278, 0
          %s280 = scalar_select %p279, %s278, 0
          %282 = vsyncadd %s274, 0
          %s283 = sadd.s32 %s280, %s27
          %s284 = smul.addr %s283, 8
          %s285 = scalar_lea.hbm %s2, %s284
          %s287 = sshll.u32 %s285, 4
          %s288 = int_to_ptr.hbm [resolvable:$true] %s287
          %s289 = sshll.u32 %s277, 4
          %s290 = int_to_ptr.vmem [resolvable:$true] %s289
          %292 = dma.hbm_to_vmem [thread:$0]  %s288, 128, %s290, %s274
        $region36: #{tpu_custom_call.1} parent=23 // pred_fallthru
          _
      $region24: #{tpu_custom_call.1} parent=5 // pred_fallthru
        _
      %p293 = scmp.le.s32.totalorder 1, %s20
      %p294 = scmp.lt.s32.totalorder %s20, 3
      %p295 = pnand %p293, %p294
      %p296 = pneg %p295
      // Predicated region
      $region37: #{tpu_custom_call.1} parent=5 // pred_check
        _
      $region38: #{tpu_custom_call.1} parent=5 // pred_check_branch
        %298 = sbr.rel (%p295) target = $region40
      $region39: #{tpu_custom_call.1} parent=5 // pred_region
        %s299 = ssub.s32 %s20, 1
        %s300 = sand.u32 %s89, 1
        %s301 = scalar_lea.sflag [#allocation3], %s300
        %s302 = sand.u32 %s89, 1
        %s303 = smul.addr %s302, 8
        %s304 = scalar_lea.vmem [#allocation2], %s303
        // Predicated region
        $region41: #{tpu_custom_call.1} parent=39 // pred_check
          %p305 = pneg %p102
        $region42: #{tpu_custom_call.1} parent=39 // pred_check_branch
          %307 = sbr.rel (%p305) target = $region44
        $region43: #{tpu_custom_call.1} parent=39 // pred_region
          %309 = dma.done %s301, 128
        $region44: #{tpu_custom_call.1} parent=39 // pred_fallthru
          _
        %s310 = sand.u32 %s123, 1
        %s311 = scalar_lea.sflag [#allocation6], %s310
        %s312 = sand.u32 %s123, 1
        %s313 = smul.addr %s312, 8
        %s314 = scalar_lea.vmem [#allocation5], %s313
        // Predicated region
        $region45: #{tpu_custom_call.1} parent=39 // pred_check
          %p315 = pneg %p136
        $region46: #{tpu_custom_call.1} parent=39 // pred_check_branch
          %317 = sbr.rel (%p315) target = $region48
        $region47: #{tpu_custom_call.1} parent=39 // pred_region
          %319 = dma.done %s311, 128
        $region48: #{tpu_custom_call.1} parent=39 // pred_fallthru
          _
        %p320 = scmp.lt.s32.totalorder %s30, 0
        %s321 = scalar_select %p320, %s30, 0
        %p322 = scmp.lt.s32.totalorder %s29, 1
        %s323 = scalar_select %p322, %s29, 1
        %p324 = scmp.lt.s32.totalorder %s321, 0
        %s325 = scalar_select %p324, %s321, 0
        %s326 = sadd.s32 %s325, %s323
        %s327 = smul.addr %s326, 8
        %s328 = scalar_lea.vmem %s0, %s327
        %p329 = pneg %p64
        %p330 = pneg %p61
        %s331 = sand.u32 %s89, 1
        %s332 = scalar_lea.sflag [#allocation3], %s331
        %s333 = sand.u32 %s89, 1
        %s334 = smul.addr %s333, 8
        %s335 = scalar_lea.vmem [#allocation2], %s334
        %p336 = pneg %p102
        %p337 = pneg %p99
        %s338 = sand.u32 %s123, 1
        %s339 = scalar_lea.sflag [#allocation6], %s338
        %s340 = sand.u32 %s123, 1
        %s341 = smul.addr %s340, 8
        %s342 = scalar_lea.vmem [#allocation5], %s341
        %p343 = pneg %p136
        %p344 = pneg %p133
        %p345 = pneg %p157
        %p346 = pneg %p154
        %p347 = pneg %p178
        %p348 = pneg %p175
        %p349 = pneg %p206
        %p350 = pneg %p203
        %s351 = sand.u32 %s193, 1
        %s352 = scalar_lea.sflag [#allocation4], %s351
        %s353 = sand.u32 %s193, 1
        %s354 = smul.addr %s353, 8
        %s355 = scalar_lea.vmem [#allocation7], %s354
        %p356 = scmp.lt.s32.totalorder %s30, 0
        %s357 = scalar_select %p356, %s30, 0
        %p358 = scmp.lt.s32.totalorder %s29, 1
        %s359 = scalar_select %p358, %s29, 1
        %p360 = scmp.lt.s32.totalorder %s357, 0
        %s361 = scalar_select %p360, %s357, 0
        %s362 = sadd.s32 %s361, %s359
        %s363 = smul.addr %s362, 8
        %s364 = scalar_lea.vmem %s0, %s363
        %p365 = scmp.lt.s32.totalorder %s30, 0
        %s366 = scalar_select %p365, %s30, 0
        %s367 = ssub.s32 %s30, 1
        %p368 = scmp.lt.s32.totalorder %s367, 0
        %s369 = scalar_select %p368, %s367, 0
        %p370 = scmp.gt.s32.totalorder %s369, 0
        %s371 = scalar_select %p370, %s369, 0
        %s372 = sadd.s32 %s30, 1
        %p373 = scmp.lt.s32.totalorder %s372, 0
        %s374 = scalar_select %p373, %s372, 0
        %v375 = vld [vmem:[%s304] sm:$0xff]
        %v376 = vld [vmem:[%s364] sm:$0xff]
        %v377 = vld [vmem:[%s314] sm:$0xff]
        %s378 = smul.u32 %s30, 128
        %s379 = ssub.s32 %s378, 128
        %v380 = vlaneseq
        %v381 = vand.u32 %v380, 127
        %v382 = vadd.s32 %v381, 128
        %v383 = vadd.s32 %v381, 256
        %v384 = vstv %s379
        %v385 = vadd.s32 %v384, %v381
        %v386 = vadd.s32 %v384, %v382
        %v387 = vadd.s32 %v384, %v383
        %vm388 = vcmp.ge.s32.totalorder %v385, 0
        %vm389 = vcmp.ge.s32.totalorder %v386, 0
        %vm390 = vcmp.ge.s32.totalorder %v387, 0
        %vm391 = vcmp.lt.s32.totalorder %v385, 16
        %vm392 = vcmp.lt.s32.totalorder %v386, 16
        %vm393 = vcmp.lt.s32.totalorder %v387, 16
        %vm394 = vmand %vm388, %vm391
        %vm395 = vmand %vm389, %vm392
        %vm396 = vmand %vm390, %vm393
        %v397 = vsel %vm394, %v375, 0.0
        %v398 = vsel %vm395, %v376, 0.0
        %v399 = vsel %vm396, %v377, 0.0
        %v400 = vld [vmem:[%s3] sm:$0xff]
        %v401 = vld [vmem:[%s4] sm:$0xff]
        %403 = vset.pattern.permute.xlu0 0
        %404 = vperm.xlu0 %403, %v400
        %v405 = vpop.permute.xlu0 %404
        %v407 = vmul.f32 %v405, %v397
        %v408 = vmul.f32 %v405, %v398
        %v409 = vadd.f32 %v407, 0.0
        %v410 = vadd.f32 %v408, 0.0
        %412 = vset.pattern.permute.xlu0 0
        %413 = vperm.xlu0 %412, %v401
        %v414 = vpop.permute.xlu0 %413
        %v416 = vmul.f32 %v414, %v397
        %v417 = vmul.f32 %v414, %v398
        %v418 = vadd.f32 %v416, 0.0
        %v419 = vadd.f32 %v417, 0.0
        %420 = vset.pattern.permute.xlu0 1
        %421 = vperm.xlu0 %420, %v400
        %v422 = vpop.permute.xlu0 %421
        %v424 = vmul.f32 %v422, %v398
        %426 = vrot.lane.b32.xlu0 %v424, 127
        %v427 = vpop.permute.xlu0 %426
        %v429 = vadd.f32 %v409, %v427
        %v430 = vadd.f32 %v410, %v427
        %431 = vset.pattern.permute.xlu0 1
        %432 = vperm.xlu0 %431, %v401
        %v433 = vpop.permute.xlu0 %432
        %v435 = vmul.f32 %v433, %v398
        %437 = vrot.lane.b32.xlu0 %v435, 127
        %v438 = vpop.permute.xlu0 %437
        %v440 = vadd.f32 %v418, %v438
        %v441 = vadd.f32 %v419, %v438
        %442 = vset.pattern.permute.xlu0 2
        %443 = vperm.xlu0 %442, %v400
        %v444 = vpop.permute.xlu0 %443
        %v446 = vmul.f32 %v444, %v398
        %v447 = vmul.f32 %v444, %v399
        %450 = vrot.lane.b32.xlu0 %v446, 126
        %v451 = vpop.permute.xlu0 %450
        %452 = vrot.lane.b32.xlu0 %v447, 126
        %v453 = vpop.permute.xlu0 %452
        %vm454 = vcmask 1031168
        %v455 = vsel %vm454, %v451, %v453
        %v458 = vadd.f32 %v429, %v451
        %v459 = vadd.f32 %v430, %v455
        %460 = vset.pattern.permute.xlu0 2
        %461 = vperm.xlu0 %460, %v401
        %v462 = vpop.permute.xlu0 %461
        %v464 = vmul.f32 %v462, %v398
        %v465 = vmul.f32 %v462, %v399
        %468 = vrot.lane.b32.xlu0 %v464, 126
        %v469 = vpop.permute.xlu0 %468
        %470 = vrot.lane.b32.xlu0 %v465, 126
        %v471 = vpop.permute.xlu0 %470
        %v472 = vsel %vm454, %v469, %v471
        %v475 = vadd.f32 %v440, %v469
        %v476 = vadd.f32 %v441, %v472
        %v479 = vrot.slane %v475, 4
        %v480 = vrot.slane %v476, 4
        %vm483 = vcmask 1043456
        %v484 = vsel %vm483, %v479, %v479
        %v485 = vsel %vm483, %v480, %v480
        %v486 = vadd.f32 %v458, %v484
        %v487 = vadd.f32 %v459, %v485
        %490 = vrot.lane.b32.xlu0 %v486, 1
        %v491 = vpop.permute.xlu0 %490
        %492 = vrot.lane.b32.xlu0 %v487, 1
        %v493 = vpop.permute.xlu0 %492
        %vm494 = vcmask 7168
        %v495 = vsel %vm494, %v491, %v493
        %497 = vst [vmem:[%s355] sm:$0xff] %v495
        %s498 = sand.u32 %s193, 1
        %s499 = scalar_lea.sflag [#allocation4], %s498
        %s500 = sand.u32 %s193, 1
        %s501 = smul.addr %s500, 8
        %s502 = scalar_lea.vmem [#allocation7], %s501
        // Predicated region
        $region49: #{tpu_custom_call.1} parent=39 // pred_check
          %p503 = pneg %p203
        $region50: #{tpu_custom_call.1} parent=39 // pred_check_branch
          %505 = sbr.rel (%p503) target = $region52
        $region51: #{tpu_custom_call.1} parent=39 // pred_region
          %507 = vsyncadd %s499, 0
          %s508 = sadd.s32 %s30, %s29
          %s509 = smul.addr %s508, 8
          %s510 = scalar_lea.hbm %s5, %s509
          %s512 = sshll.u32 %s502, 4
          %s513 = int_to_ptr.vmem [resolvable:$true] %s512
          %s514 = sshll.u32 %s510, 4
          %s515 = int_to_ptr.hbm [resolvable:$true] %s514
          %517 = dma.vmem_to_hbm [thread:$0]  %s513, 128, %s515, %s499
        $region52: #{tpu_custom_call.1} parent=39 // pred_fallthru
          _
      $region40: #{tpu_custom_call.1} parent=5 // pred_fallthru
        _
      %p518 = scmp.le.s32.totalorder 2, %s20
      // Predicated region
      $region53: #{tpu_custom_call.1} parent=5 // pred_check
        %p519 = pneg %p518
      $region54: #{tpu_custom_call.1} parent=5 // pred_check_branch
        %521 = sbr.rel (%p519) target = $region56
      $region55: #{tpu_custom_call.1} parent=5 // pred_region
        %s522 = ssub.s32 %s20, 2
        // Predicated region
        $region57: #{tpu_custom_call.1} parent=55 // pred_check
          %p523 = pneg %p209
        $region58: #{tpu_custom_call.1} parent=55 // pred_check_branch
          %525 = sbr.rel (%p523) target = $region60
        $region59: #{tpu_custom_call.1} parent=55 // pred_region
          %s526 = sand.u32 %s194, 1
          %s527 = scalar_lea.sflag [#allocation4], %s526
          %s528 = sand.u32 %s194, 1
          %s529 = smul.addr %s528, 8
          %s530 = scalar_lea.vmem [#allocation7], %s529
          %532 = dma.done %s527, 128
        $region60: #{tpu_custom_call.1} parent=55 // pred_fallthru
          _
      $region56: #{tpu_custom_call.1} parent=5 // pred_fallthru
        _
    $region6: #{tpu_custom_call.1} parent=1 // loop_footer
      %s24 = sadd.s32 1, %s20
    $region7: #{tpu_custom_call.1} parent=1 // loop_footer_branch
      %19 = sbr.rel target = $region3
    $region8: #{tpu_custom_call.1} parent=1 // loop_exit
      _
    %533 = vsyncpa [#allocation3], 1
    %s534 = scalar_lea.sflag [#allocation3], 1
    %535 = vsyncpa %s534, 1
    %536 = vsyncpa [#allocation6], 1
    %s537 = scalar_lea.sflag [#allocation6], 1
    %538 = vsyncpa %s537, 1
    %539 = vsyncpa [#allocation4], 1
    %s540 = scalar_lea.sflag [#allocation4], 1
    %541 = vsyncpa %s540, 1

</llo_original>
